<compile_context>
chip_gen: v7x
topology: tpu7x:2x2x1
jax: 0.10.0
libtpu: 0.0.40
codegen_flags: <defaults>
</compile_context>

<pallas_src>
import functools

import jax
import jax.numpy as jnp
from jax.experimental import pallas as pl
from jax.experimental.pallas import tpu as pltpu


def _conv1x1_bn_kernel(x_ref, w_ref, b_ref, o_ref):
    """One grid step: NB batch elements x one lane-tile of flattened output pixels.

    x_ref: (NB, Cin, TS)   input pixels, original dtype (cast to compute dtype here)
    w_ref: (Cout, Cin)     conv weight with BN scale pre-folded (compute dtype)
    b_ref: (Cout, 1)       folded BN bias = beta - mean * scale (f32)
    o_ref: (NB, Cout, TS)  output tile (out dtype)
    """
    w = w_ref[...]
    b = b_ref[...]
    # Static unroll over the (small) batch chunk: each iteration is one clean 2-D MXU
    # matmul (Cout, Cin) @ (Cin, TS) with f32 accumulation.
    for i in range(x_ref.shape[0]):
        x_i = x_ref[i].astype(w.dtype)              # in-kernel cast: no wrapper cast pass
        acc = jnp.dot(w, x_i, preferred_element_type=jnp.float32)
        o_ref[i] = (acc + b).astype(o_ref.dtype)


def _choose_tiling(n, cin, cout, s, x_bytes, out_bytes, w_bytes):
    """Pick (nb, ts, vmem_limit_bytes) for grid = (ceil(n/nb), ceil(s/ts))."""
    # Spatial lane tile: full S when moderate, otherwise a multiple of 128.
    ts = s if s <= 2048 else 2048

    # Batch elements per grid step: aim for >= ~512 lane-elements of work per step
    # (measured ~85% of HBM roofline needs ~512+ lane-elements), bounded by batch size.
    nb = max(1, min(n, pl.cdiv(512, ts)))

    def steps(nb_, ts_):
        return pl.cdiv(n, nb_) * pl.cdiv(s, ts_)

    # Keep at least two grid steps when possible so both v7x TensorCores get work.
    if steps(nb, ts) < 2:
        if n > 1:
            nb = pl.cdiv(n, 2)
        elif s >= 256:
            ts = min(s, max(128, (s // 2) // 128 * 128))

    # Double-buffered VMEM footprint of one grid step.
    def footprint(nb_, ts_):
        return (2 * nb_ * cin * ts_ * x_bytes        # input blocks (original dtype)
                + 2 * nb_ * cout * ts_ * out_bytes   # output blocks
                + 2 * cout * cin * w_bytes           # folded weight (grid-invariant)
                + 2 * cout * 4)                      # folded bias (f32)

    budget = 10 * 1024 * 1024
    while footprint(nb, ts) > budget and nb > 1:
        nb = max(1, nb // 2)
    while footprint(nb, ts) > budget and ts > 256:
        new_ts = min(s, max(128, (ts // 2) // 128 * 128))
        if new_ts >= ts:
            break
        ts = new_ts

    fp = footprint(nb, ts)
    vmem_limit = None if fp <= 14 * 1024 * 1024 else 48 * 1024 * 1024
    return nb, ts, vmem_limit


@functools.partial(jax.jit,
                   static_argnames=("stride", "eps", "compute_dtype", "out_dtype"))
def resnet_downsample(x_nchw, conv_w, gamma, beta, running_mean, running_var,
                      *, stride: int, eps: float = 1e-5,
                      compute_dtype=jnp.bfloat16, out_dtype=None):
    """x_nchw: (N, Cin, H, W). conv_w: (Cout, Cin, 1, 1). Returns (N, Cout, Ho, Wo)."""
    n, cin, h, w = x_nchw.shape
    cout = conv_w.shape[0]
    if out_dtype is None:
        out_dtype = x_nchw.dtype

    # Spatial subsample of the 1x1 strided conv (single XLA strided slice; the free
    # reshape flattens (Ho, Wo) -> S so lanes stay dense even when Wo < 128).  No cast
    # here -- it happens inside the kernel.
    x_s = x_nchw[:, :, ::stride, ::stride]                     # (N, Cin, Ho, Wo)
    ho, wo = x_s.shape[2], x_s.shape[3]
    s = ho * wo
    x_flat = x_s.reshape(n, cin, s)                            # (N, Cin, S), original dtype

    # Fold eval-mode BatchNorm into the conv weight (row scaling) + per-channel bias.
    scale = gamma.astype(jnp.float32) / jnp.sqrt(running_var.astype(jnp.float32) + eps)
    w_mat = (conv_w.reshape(cout, cin).astype(jnp.float32)
             * scale[:, None]).astype(compute_dtype)           # (Cout, Cin)
    bias = (beta.astype(jnp.float32)
            - running_mean.astype(jnp.float32) * scale).reshape(cout, 1)  # (Cout, 1) f32

    nb, ts, vmem_limit = _choose_tiling(
        n, cin, cout, s,
        x_bytes=x_flat.dtype.itemsize,
        out_bytes=jnp.dtype(out_dtype).itemsize,
        w_bytes=jnp.dtype(compute_dtype).itemsize)
    grid = (pl.cdiv(n, nb), pl.cdiv(s, ts))

    out_flat = pl.pallas_call(
        _conv1x1_bn_kernel,
        out_shape=jax.ShapeDtypeStruct((n, cout, s), out_dtype),
        grid_spec=pltpu.PrefetchScalarGridSpec(
            num_scalar_prefetch=0,
            grid=grid,
            in_specs=[
                pl.BlockSpec((nb, cin, ts), lambda b, j: (b, 0, j)),
                pl.BlockSpec((cout, cin), lambda b, j: (0, 0)),   # grid-invariant weight
                pl.BlockSpec((cout, 1), lambda b, j: (0, 0)),     # grid-invariant bias
            ],
            out_specs=pl.BlockSpec((nb, cout, ts), lambda b, j: (b, 0, j)),
        ),
        compiler_params=pltpu.CompilerParams(
            dimension_semantics=("parallel", "parallel"),
            # Let XLA fuse the strided-slice/reshape producer of x into the input stream.
            allow_input_fusion=[True, False, False],
            vmem_limit_bytes=vmem_limit),
    )(x_flat, w_mat, bias)

    return out_flat.reshape(n, cout, ho, wo)                    # already NCHW


def _reference(x_nchw, conv_w, gamma, beta, running_mean, running_var, stride, eps=1e-5):
    x_s = x_nchw[:, :, ::stride, ::stride]
    w = conv_w.reshape(conv_w.shape[0], conv_w.shape[1])
    y = jnp.einsum("nchw,oc->nohw", x_s, w)
    scale = gamma / jnp.sqrt(running_var + eps)
    bias = beta - running_mean * scale
    return y * scale[None, :, None, None] + bias[None, :, None, None]


if __name__ == "__main__":
    # Config: in_planes=4, out_planes=8, stride=2, norm=BatchNorm2d (eval-mode).
    N, CIN, H, W = 2, 4, 16, 16
    COUT, STRIDE = 8, 2

    key = jax.random.PRNGKey(0)
    k_x, k_w, k_g, k_b, k_m, k_v = jax.random.split(key, 6)

    x = jax.random.normal(k_x, (N, CIN, H, W), dtype=jnp.float32)
    conv_w = jax.random.normal(k_w, (COUT, CIN, 1, 1), dtype=jnp.float32) * 0.1
    gamma = jax.random.normal(k_g, (COUT,), dtype=jnp.float32) * 0.1 + 1.0
    beta = jax.random.normal(k_b, (COUT,), dtype=jnp.float32) * 0.1
    running_mean = jax.random.normal(k_m, (COUT,), dtype=jnp.float32) * 0.1
    running_var = jax.nn.softplus(jax.random.normal(k_v, (COUT,), dtype=jnp.float32)) + 0.5

    ref = _reference(x, conv_w, gamma, beta, running_mean, running_var, STRIDE)

    # Exact path (f32 compute, f32 out) -- validates kernel math/layout tightly.
    out_f32 = resnet_downsample(x, conv_w, gamma, beta, running_mean, running_var,
                                stride=STRIDE, compute_dtype=jnp.float32)
    out_f32 = jax.block_until_ready(out_f32)
    assert out_f32.shape == (N, COUT, H // STRIDE, W // STRIDE), out_f32.shape
    assert jnp.allclose(out_f32, ref, atol=1e-4, rtol=1e-4), \
        float(jnp.max(jnp.abs(out_f32 - ref)))

    # Default fast path (bf16 matmul, f32 accumulation, f32 out).
    out_fast = resnet_downsample(x, conv_w, gamma, beta, running_mean, running_var,
                                 stride=STRIDE)
    out_fast = jax.block_until_ready(out_fast)
    assert out_fast.shape == (N, COUT, H // STRIDE, W // STRIDE), out_fast.shape
    assert jnp.allclose(out_fast, ref, atol=5e-2, rtol=5e-2), \
        float(jnp.max(jnp.abs(out_fast - ref)))

    # bf16 output path (halves store traffic on mem-bound shapes).
    out_lo = resnet_downsample(x, conv_w, gamma, beta, running_mean, running_var,
                               stride=STRIDE, out_dtype=jnp.bfloat16)
    out_lo = jax.block_until_ready(out_lo)
    assert out_lo.dtype == jnp.bfloat16
    assert jnp.allclose(out_lo.astype(jnp.float32), ref, atol=1e-1, rtol=1e-1), \
        float(jnp.max(jnp.abs(out_lo.astype(jnp.float32) - ref)))

    print("KERNEL_OK")
</pallas_src>

<mosaic_0001>
module attributes {stable_mosaic.version = 11 : i64} {
  func.func @_conv1x1_bn_kernel(%arg0: i32, %arg1: i32, %arg2: memref<1x4x64xf32, #tpu.memory_space<vmem>>, %arg3: memref<8x4xf32, #tpu.memory_space<vmem>>, %arg4: memref<8x1xf32, #tpu.memory_space<vmem>>, %arg5: memref<1x8x64xf32, #tpu.memory_space<vmem>>) attributes {dimension_semantics = [#tpu.dimension_semantics<parallel>, #tpu.dimension_semantics<parallel>], iteration_bounds = array<i64: 2, 1>, scalar_prefetch = 0 : i64, scratch_operands = 0 : i64, tpu.core_type = #tpu.core_type<tc>, window_params = [{transform_indices = @transform_0, window_bounds = array<i64: 1, 4, 64>}, {pipeline_mode = #tpu.pipeline_mode<synchronous>, transform_indices = @transform_1, window_bounds = array<i64: 8, 4>}, {pipeline_mode = #tpu.pipeline_mode<synchronous>, transform_indices = @transform_2, window_bounds = array<i64: 8, 1>}, {transform_indices = @transform_3, window_bounds = array<i64: 1, 8, 64>}]} {
    %c0 = arith.constant 0 : index
    %c0_0 = arith.constant 0 : index
    %0 = vector.load %arg3[%c0, %c0_0] : memref<8x4xf32, #tpu.memory_space<vmem>>, vector<8x4xf32>
    %c0_1 = arith.constant 0 : index
    %c0_2 = arith.constant 0 : index
    %1 = vector.load %arg4[%c0_1, %c0_2] : memref<8x1xf32, #tpu.memory_space<vmem>>, vector<8x1xf32>
    %c0_3 = arith.constant 0 : index
    %c0_4 = arith.constant 0 : index
    %c0_5 = arith.constant 0 : index
    %2 = vector.load %arg2[%c0_3, %c0_4, %c0_5] : memref<1x4x64xf32, #tpu.memory_space<vmem>>, vector<1x4x64xf32>
    %3 = vector.shape_cast %2 : vector<1x4x64xf32> to vector<4x64xf32>
    %cst = arith.constant dense<0.000000e+00> : vector<8x64xf32>
    %4 = tpu.matmul %0, %3, %cst {dimension_numbers = #tpu.dot_dimension_numbers<[1], [0], [0], [1], [0, 0, 1, 1], [], []>} : vector<8x4xf32>, vector<4x64xf32>, vector<8x64xf32> -> vector<8x64xf32>
    %5 = vector.broadcast %1 : vector<8x1xf32> to vector<8x64xf32>
    %6 = arith.addf %4, %5 : vector<8x64xf32>
    %c0_6 = arith.constant 0 : index
    %c0_7 = arith.constant 0 : index
    %c0_8 = arith.constant 0 : index
    %7 = vector.load %arg5[%c0_6, %c0_7, %c0_8] : memref<1x8x64xf32, #tpu.memory_space<vmem>>, vector<1x8x64xf32>
    %8 = vector.shape_cast %7 : vector<1x8x64xf32> to vector<8x64xf32>
    %9 = vector.shape_cast %6 : vector<8x64xf32> to vector<1x8x64xf32>
    tpu.vector_store %arg5[%c0_6, %c0_7, %c0_8], %9 {strides = array<i32>} : memref<1x8x64xf32, #tpu.memory_space<vmem>>, vector<1x8x64xf32>,
    return
  }
  func.func @transform_0(%arg0: i32, %arg1: i32) -> (i32, i32, i32) {
    %c0_i32 = arith.constant 0 : i32
    %c0_i32_0 = arith.constant 0 : i32
    return %arg0, %c0_i32, %arg1 : i32, i32, i32
  }
  func.func @transform_1(%arg0: i32, %arg1: i32) -> (i32, i32) {
    %c0_i32 = arith.constant 0 : i32
    %c0_i32_0 = arith.constant 0 : i32
    %c0_i32_1 = arith.constant 0 : i32
    return %c0_i32, %c0_i32_0 : i32, i32
  }
  func.func @transform_2(%arg0: i32, %arg1: i32) -> (i32, i32) {
    %c0_i32 = arith.constant 0 : i32
    %c0_i32_0 = arith.constant 0 : i32
    %c0_i32_1 = arith.constant 0 : i32
    return %c0_i32, %c0_i32_0 : i32, i32
  }
  func.func @transform_3(%arg0: i32, %arg1: i32) -> (i32, i32, i32) {
    %c0_i32 = arith.constant 0 : i32
    %c0_i32_0 = arith.constant 0 : i32
    return %arg0, %c0_i32, %arg1 : i32, i32, i32
  }
}

</mosaic_0001>

<llo_original>
// kernel: resnet_downsample.1
$region0: #{resnet_downsample.1}
  #allocation0 [shape = 'u32[]', space=smem, size = 0x4, offset = 0x4, fixed_abs, tag = 'smem constant byte address 0x4 - core index']
  #allocation1 [shape = 'u32[144,128]{1,0:T(1,128)}', space=vmem, size = 0x12000, scoped, tag = 'internal scratch']
  %s0 = inlined_call_operand.vmem [shape: f32[2,4,64], index: 0, kind: input, shape index: {}]
  %s1 = inlined_call_operand.vmem [shape: f32[8,4], index: 1, kind: input, shape index: {}]
  %s2 = inlined_call_operand.vmem [shape: f32[8,1], index: 2, kind: input, shape index: {}]
  %s3 = inlined_call_operand.vmem [shape: f32[2,8,64], index: 3, kind: output, shape index: {}]
  %s4 = sld [smem:[#allocation0]]
  $region45: #{resnet_downsample.1} parent=0
    _
  %s6 = ssub.s32 1, %s4
  %s7 = scalar_select 0, %s6, %s4
  loop: start=0, step=1, limit=4
  $region2: #{resnet_downsample.1} parent=0 // loop_pre_header
    _
  $region3: #{resnet_downsample.1} parent=0 // loop_header
    %s9 = sphi 0, %s13
    %p10 = scmp.ge.s32.totalorder %s9, 4
    %s16 = sphi 0, %s28
    %s17 = sphi 0, %s24
    %s18 = sphi 0, %s16
    %s19 = sphi 0, %s17
    %s20 = sphi 0, %s18
    %s21 = sphi 0, %s19
    %s33 = sphi 0, %s35
    %s36 = sphi 0, %s33
    %s37 = sphi 0, %s36
    %s53 = sphi 0, %s37
    %s57 = sphi 0, %s57
    %s59 = sphi 0, %s57
    %s60 = sphi 0, %s59
    %s74 = sphi 0, %s60
    %s78 = sphi 0, %s78
    %s80 = sphi 0, %s78
    %s81 = sphi 0, %s80
    %s95 = sphi 0, %s81
    %s103 = sphi 0, %s105
    %s106 = sphi 0, %s103
    %s107 = sphi 0, %s106
    %s123 = sphi 0, %s107
  $region4: #{resnet_downsample.1} parent=0 // loop_header_branch
    %12 = sbr.rel (%p10) target = $region8
  $region5: #{resnet_downsample.1} parent=0 // loop_body
    %s14 = ssub.s32 %s9, 1
    %s15 = ssub.s32 %s9, 2
    %s22 = sadd.s32 1, %s17
    %p23 = scmp.ge.s32.totalorder %s22, 1
    %s24 = scalar_select %p23, 0, %s22
    %s25 = sadd.s32 1, %s16
    %s26 = scalar_select %p23, %s25, %s16
    %p27 = scmp.ge.s32.totalorder %s26, 2
    %s28 = scalar_select %p27, 0, %s26
    %s29 = ssub.s32 %s16, %s28
    %s30 = ssub.s32 %s17, %s24
    %s31 = sor.u32 %s29, %s30
    %p32 = scmp.eq.s32.totalorder %s31, 0
    %s34 = sadd.s32 %s33, 1
    %s35 = scalar_select %p32, %s33, %s34
    %p38 = pneg %p32
    %p39 = scmp.eq.s32.totalorder %s9, 1
    %p40 = por %p38, %p39
    %p41 = scmp.ne.s32.totalorder %s33, %s36
    %p42 = scmp.eq.s32.totalorder %s9, 0
    %p43 = por %p41, %p42
    %p44 = scmp.ne.s32.totalorder %s33, %s36
    %p45 = scmp.eq.s32.totalorder %s14, 1
    %p46 = por %p44, %p45
    %p47 = scmp.ne.s32.totalorder %s36, %s37
    %p48 = scmp.eq.s32.totalorder %s14, 0
    %p49 = por %p47, %p48
    %p50 = scmp.ne.s32.totalorder %s36, %s37
    %p51 = scmp.eq.s32.totalorder %s15, 1
    %p52 = por %p50, %p51
    %p54 = scmp.ne.s32.totalorder %s37, %s53
    %p55 = scmp.eq.s32.totalorder %s15, 0
    %p56 = por %p54, %p55
    %s58 = sadd.s32 %s57, 1
    %p61 = scmp.eq.s32.totalorder %s9, 1
    %p62 = scmp.ne.s32.totalorder %s57, %s59
    %p63 = scmp.eq.s32.totalorder %s9, 0
    %p64 = por %p62, %p63
    %p65 = scmp.ne.s32.totalorder %s57, %s59
    %p66 = scmp.eq.s32.totalorder %s14, 1
    %p67 = por %p65, %p66
    %p68 = scmp.ne.s32.totalorder %s59, %s60
    %p69 = scmp.eq.s32.totalorder %s14, 0
    %p70 = por %p68, %p69
    %p71 = scmp.ne.s32.totalorder %s59, %s60
    %p72 = scmp.eq.s32.totalorder %s15, 1
    %p73 = por %p71, %p72
    %p75 = scmp.ne.s32.totalorder %s60, %s74
    %p76 = scmp.eq.s32.totalorder %s15, 0
    %p77 = por %p75, %p76
    %s79 = sadd.s32 %s78, 1
    %p82 = scmp.eq.s32.totalorder %s9, 1
    %p83 = scmp.ne.s32.totalorder %s78, %s80
    %p84 = scmp.eq.s32.totalorder %s9, 0
    %p85 = por %p83, %p84
    %p86 = scmp.ne.s32.totalorder %s78, %s80
    %p87 = scmp.eq.s32.totalorder %s14, 1
    %p88 = por %p86, %p87
    %p89 = scmp.ne.s32.totalorder %s80, %s81
    %p90 = scmp.eq.s32.totalorder %s14, 0
    %p91 = por %p89, %p90
    %p92 = scmp.ne.s32.totalorder %s80, %s81
    %p93 = scmp.eq.s32.totalorder %s15, 1
    %p94 = por %p92, %p93
    %p96 = scmp.ne.s32.totalorder %s81, %s95
    %p97 = scmp.eq.s32.totalorder %s15, 0
    %p98 = por %p96, %p97
    %s99 = ssub.s32 %s16, %s28
    %s100 = ssub.s32 %s17, %s24
    %s101 = sor.u32 %s99, %s100
    %p102 = scmp.eq.s32.totalorder %s101, 0
    %s104 = sadd.s32 %s103, 1
    %s105 = scalar_select %p102, %s103, %s104
    %p108 = pneg %p102
    %p109 = scmp.eq.s32.totalorder %s9, 1
    %p110 = por %p108, %p109
    %p111 = scmp.ne.s32.totalorder %s103, %s106
    %p112 = scmp.eq.s32.totalorder %s9, 0
    %p113 = por %p111, %p112
    %p114 = scmp.ne.s32.totalorder %s103, %s106
    %p115 = scmp.eq.s32.totalorder %s14, 1
    %p116 = por %p114, %p115
    %p117 = scmp.ne.s32.totalorder %s106, %s107
    %p118 = scmp.eq.s32.totalorder %s14, 0
    %p119 = por %p117, %p118
    %p120 = scmp.ne.s32.totalorder %s106, %s107
    %p121 = scmp.eq.s32.totalorder %s15, 1
    %p122 = por %p120, %p121
    %p124 = scmp.ne.s32.totalorder %s107, %s123
    %p125 = scmp.eq.s32.totalorder %s15, 0
    %p126 = por %p124, %p125
    %p127 = scmp.le.s32.totalorder 1, %s9
    %p128 = scmp.lt.s32.totalorder %s9, 3
    %p129 = pnand %p127, %p128
    %p130 = pneg %p129
    // Predicated region
    $region9: #{resnet_downsample.1} parent=5 // pred_check
      _
    $region10: #{resnet_downsample.1} parent=5 // pred_check_branch
      %132 = sbr.rel (%p129) target = $region12
    $region11: #{resnet_downsample.1} parent=5 // pred_region
      %s133 = ssub.s32 %s9, 1
      // Predicated region
      $region13: #{resnet_downsample.1} parent=11 // pred_check
        %p134 = pneg %p70
      $region14: #{resnet_downsample.1} parent=11 // pred_check_branch
        %136 = sbr.rel (%p134) target = $region16
      $region15: #{resnet_downsample.1} parent=11 // pred_region
        _
      $region16: #{resnet_downsample.1} parent=11 // pred_fallthru
        _
      // Predicated region
      $region17: #{resnet_downsample.1} parent=11 // pred_check
        %p137 = pneg %p91
      $region18: #{resnet_downsample.1} parent=11 // pred_check_branch
        %139 = sbr.rel (%p137) target = $region20
      $region19: #{resnet_downsample.1} parent=11 // pred_region
        _
      $region20: #{resnet_downsample.1} parent=11 // pred_fallthru
        _
    $region12: #{resnet_downsample.1} parent=5 // pred_fallthru
      _
    %p140 = scmp.lt.s32.totalorder %s9, 2
    // Predicated region
    $region21: #{resnet_downsample.1} parent=5 // pred_check
      %p141 = pneg %p140
    $region22: #{resnet_downsample.1} parent=5 // pred_check_branch
      %143 = sbr.rel (%p141) target = $region24
    $region23: #{resnet_downsample.1} parent=5 // pred_region
      // Predicated region
      $region25: #{resnet_downsample.1} parent=23 // pred_check
        %p144 = pneg %p43
      $region26: #{resnet_downsample.1} parent=23 // pred_check_branch
        %146 = sbr.rel (%p144) target = $region28
      $region27: #{resnet_downsample.1} parent=23 // pred_region
        %p147 = scmp.lt.s32.totalorder %s16, 1
        %s148 = scalar_select %p147, %s16, 1
        %p149 = scmp.lt.s32.totalorder %s17, 0
        %s150 = scalar_select %p149, %s17, 0
        %s151 = sadd.s32 %s150, %s148
        %s152 = smul.addr %s151, 4
        %s153 = scalar_lea.vmem %s0, %s152
      $region28: #{resnet_downsample.1} parent=23 // pred_fallthru
        _
    $region24: #{resnet_downsample.1} parent=5 // pred_fallthru
      _
    %p154 = scmp.le.s32.totalorder 1, %s9
    %p155 = scmp.lt.s32.totalorder %s9, 3
    %p156 = pnand %p154, %p155
    %p157 = pneg %p156
    // Predicated region
    $region29: #{resnet_downsample.1} parent=5 // pred_check
      _
    $region30: #{resnet_downsample.1} parent=5 // pred_check_branch
      %159 = sbr.rel (%p156) target = $region32
    $region31: #{resnet_downsample.1} parent=5 // pred_region
      %s160 = ssub.s32 %s9, 1
      %p161 = scmp.lt.s32.totalorder %s18, 1
      %s162 = scalar_select %p161, %s18, 1
      %p163 = scmp.lt.s32.totalorder %s19, 0
      %s164 = scalar_select %p163, %s19, 0
      %s165 = sadd.s32 %s164, %s162
      %s166 = smul.addr %s165, 4
      %s167 = scalar_lea.vmem %s0, %s166
      %p168 = pneg %p49
      %p169 = pneg %p46
      %p170 = pneg %p70
      %p171 = pneg %p67
      %p172 = pneg %p91
      %p173 = pneg %p88
      %p174 = pneg %p119
      %p175 = pneg %p116
      %p176 = scmp.lt.s32.totalorder %s18, 1
      %s177 = scalar_select %p176, %s18, 1
      %p178 = scmp.lt.s32.totalorder %s19, 0
      %s179 = scalar_select %p178, %s19, 0
      %s180 = sadd.s32 %s179, %s177
      %s181 = smul.addr %s180, 8
      %s182 = scalar_lea.vmem %s3, %s181
      %p183 = scmp.lt.s32.totalorder %s18, 1
      %s184 = scalar_select %p183, %s18, 1
      %p185 = scmp.lt.s32.totalorder %s19, 0
      %s186 = scalar_select %p185, %s19, 0
      %s187 = sadd.s32 %s186, %s184
      %s188 = smul.addr %s187, 4
      %s189 = scalar_lea.vmem %s0, %s188
      %p190 = scmp.lt.s32.totalorder %s18, 1
      %s191 = scalar_select %p190, %s18, 1
      %p192 = scmp.lt.s32.totalorder %s19, 0
      %s193 = scalar_select %p192, %s19, 0
      %s194 = sadd.s32 %s193, %s191
      %s195 = smul.addr %s194, 8
      %s196 = scalar_lea.vmem %s3, %s195
      %v197 = vld [vmem:[%s1] sm:$0xff]
      %v198 = vld [vmem:[%s2] sm:$0xff]
      %v199 = vld [vmem:[%s189] sm:$0xf]
      %201 = vset.pattern.permute.xlu0 0
      %202 = vperm.xlu0 %201, %v198
      %v203 = vpop.permute.xlu0 %202
      %vm205 = vcmask 31744
      %v207 = vsel %vm205, %v197, 0
      %vm209 = vcmask 1043456
      %v211 = vsel %vm209, %v199, 0
      %213 = vmatprep.subr.mxu0 0.0
      %214 = vmatpush1.msra.mxu0 %v211
      %215 = vmatprep.subr.mxu0 0.0
      %216 = vmatpush1.msra.mxu0 0.0
      %217 = vmatprep.subr.mxu0 0.0
      %218 = vmatpush1.msra.mxu0 0.0
      %219 = vmatprep.subr.mxu0 0.0
      %220 = vmatpush1.msra.mxu0 0.0
      %221 = vmatprep.subr.mxu0 0.0
      %222 = vmatpush1.msra.mxu0 0.0
      %223 = vmatprep.subr.mxu0 0.0
      %224 = vmatpush1.msra.mxu0 0.0
      %225 = vmatprep.subr.mxu0 0.0
      %226 = vmatpush1.msra.mxu0 0.0
      %227 = vmatprep.subr.mxu0 0.0
      %228 = vmatpush1.msra.mxu0 0.0
      %229 = vmatprep.subr.mxu0 0.0
      %230 = vmatpush1.msra.mxu0 0.0
      %231 = vmatprep.subr.mxu0 0.0
      %232 = vmatpush1.msra.mxu0 0.0
      %233 = vmatprep.subr.mxu0 0.0
      %234 = vmatpush1.msra.mxu0 0.0
      %235 = vmatprep.subr.mxu0 0.0
      %236 = vmatpush1.msra.mxu0 0.0
      %237 = vmatprep.subr.mxu0 0.0
      %238 = vmatpush1.msra.mxu0 0.0
      %239 = vmatprep.subr.mxu0 0.0
      %240 = vmatpush1.msra.mxu0 0.0
      %241 = vmatprep.subr.mxu0 0.0
      %242 = vmatpush1.msra.mxu0 0.0
      %243 = vmatprep.subr.mxu0 0.0
      %244 = vmatpush1.msra.mxu0 0.0
      %245 = vmatprep.subr.mxu0 0.0
      %246 = vmatpush1.msra.mxu0 0.0
      %247 = vmatprep.subr.mxu0 0.0
      %248 = vmatpush1.msra.mxu0 0.0
      %249 = vmatprep.subr.mxu0 0.0
      %250 = vmatpush1.msra.mxu0 0.0
      %251 = vmatprep.subr.mxu0 0.0
      %252 = vmatpush1.msra.mxu0 0.0
      %253 = vmatprep.subr.mxu0 0.0
      %254 = vmatpush1.msra.mxu0 0.0
      %255 = vmatprep.subr.mxu0 0.0
      %256 = vmatpush1.msra.mxu0 0.0
      %257 = vmatprep.subr.mxu0 0.0
      %258 = vmatpush1.msra.mxu0 0.0
      %259 = vmatprep.subr.mxu0 0.0
      %260 = vmatpush1.msra.mxu0 0.0
      %261 = vmatprep.subr.mxu0 0.0
      %262 = vmatpush1.msra.mxu0 0.0
      %263 = vmatprep.subr.mxu0 0.0
      %264 = vmatpush1.msra.mxu0 0.0
      %265 = vmatprep.subr.mxu0 0.0
      %266 = vmatpush1.msra.mxu0 0.0
      %267 = vmatprep.subr.mxu0 0.0
      %268 = vmatpush1.msra.mxu0 0.0
      %269 = vmatprep.subr.mxu0 0.0
      %270 = vmatpush1.msra.mxu0 0.0
      %271 = vmatprep.subr.mxu0 0.0
      %272 = vmatpush1.msra.mxu0 0.0
      %273 = vmatprep.subr.mxu0 0.0
      %274 = vmatpush1.msra.mxu0 0.0
      %275 = vmatprep.subr.mxu0 0.0
      %276 = vmatpush1.msra.mxu0 0.0
      %277 = vmatprep.mubr.f32.mxu0 0.0
      %278 = vmatmul.mubr.f32.gmra.mrb[0].mxu0 %v207
      %v279 = vpop.f32.mrb[0].mxu0
      %v280 = vadd.f32 %v203, %v279
      %v281 = vpop.f32.mrb[0].mxu0
      %282 = vdwg.mxu0
      %vm283 = vcmask 523264
      %284 = vst.msk [vmem:[%s196] sm:$0xff] %vm283, %v280
      %p285 = scmp.lt.s32.totalorder %s18, 1
      %s286 = scalar_select %p285, %s18, 1
      %p287 = scmp.lt.s32.totalorder %s19, 0
      %s288 = scalar_select %p287, %s19, 0
      %s289 = sadd.s32 %s288, %s286
      %s290 = smul.addr %s289, 8
      %s291 = scalar_lea.vmem %s3, %s290
      // Predicated region
      $region33: #{resnet_downsample.1} parent=31 // pred_check
        %p292 = pneg %p116
      $region34: #{resnet_downsample.1} parent=31 // pred_check_branch
        %294 = sbr.rel (%p292) target = $region36
      $region35: #{resnet_downsample.1} parent=31 // pred_region
        _
      $region36: #{resnet_downsample.1} parent=31 // pred_fallthru
        _
    $region32: #{resnet_downsample.1} parent=5 // pred_fallthru
      _
    %p295 = scmp.le.s32.totalorder 2, %s9
    // Predicated region
    $region37: #{resnet_downsample.1} parent=5 // pred_check
      %p296 = pneg %p295
    $region38: #{resnet_downsample.1} parent=5 // pred_check_branch
      %298 = sbr.rel (%p296) target = $region40
    $region39: #{resnet_downsample.1} parent=5 // pred_region
      %s299 = ssub.s32 %s9, 2
      // Predicated region
      $region41: #{resnet_downsample.1} parent=39 // pred_check
        %p300 = pneg %p122
      $region42: #{resnet_downsample.1} parent=39 // pred_check_branch
        %302 = sbr.rel (%p300) target = $region44
      $region43: #{resnet_downsample.1} parent=39 // pred_region
        %p303 = scmp.lt.s32.totalorder %s20, 1
        %s304 = scalar_select %p303, %s20, 1
        %p305 = scmp.lt.s32.totalorder %s21, 0
        %s306 = scalar_select %p305, %s21, 0
        %s307 = sadd.s32 %s306, %s304
        %s308 = smul.addr %s307, 8
        %s309 = scalar_lea.vmem %s3, %s308
      $region44: #{resnet_downsample.1} parent=39 // pred_fallthru
        _
    $region40: #{resnet_downsample.1} parent=5 // pred_fallthru
      _
  $region6: #{resnet_downsample.1} parent=0 // loop_footer
    %s13 = sadd.s32 1, %s9
  $region7: #{resnet_downsample.1} parent=0 // loop_footer_branch
    %8 = sbr.rel target = $region3
  $region8: #{resnet_downsample.1} parent=0 // loop_exit
    _

</llo_original>
